<compile_context>
chip_gen: v7x
topology: tpu7x:2x2x1
jax: 0.10.0
libtpu: 0.0.40
codegen_flags: <defaults>
</compile_context>

<pallas_src>
import functools

import jax
import jax.numpy as jnp
from jax.experimental import pallas as pl
from jax.experimental.pallas import tpu as pltpu


def _round_up(n, m):
    return ((n + m - 1) // m) * m


def _fused_mlp_kernel(x_ref, w1_ref, b1_ref, w2_ref, b2_ref, w3_ref, b3_ref,
                      o_ref, *, mxu_dtype=None):
    """Fused 3x (Linear + ReLU) on one [C_in, S_tile] column tile.

    Weights are PyTorch-style [out, in]; biases are [out, 1] and broadcast
    along the lane (S) axis.  Accumulation, bias add and ReLU stay in f32;
    only the MXU inputs are (optionally) cast to `mxu_dtype` in VMEM.
    """
    x = x_ref[0]                                              # [C_in, S_tile]
    if mxu_dtype is not None:
        x = x.astype(mxu_dtype)
    h = jnp.dot(w1_ref[...], x, preferred_element_type=jnp.float32)
    h = jnp.maximum(h + b1_ref[...], 0.0)
    if mxu_dtype is not None:
        h = h.astype(mxu_dtype)
    h = jnp.dot(w2_ref[...], h, preferred_element_type=jnp.float32)
    h = jnp.maximum(h + b2_ref[...], 0.0)
    if mxu_dtype is not None:
        h = h.astype(mxu_dtype)
    h = jnp.dot(w3_ref[...], h, preferred_element_type=jnp.float32)
    h = jnp.maximum(h + b3_ref[...], 0.0)
    o_ref[0] = h.astype(o_ref.dtype)                          # [C_out, S_tile]


def mlp_forward(x, params, *, s_tile=512, mxu_dtype=None):
    """Pallas equivalent of the per-slice MLP forward.

    x: [B, C_in, S] -> y: [B, C_out, S], with
    y[:, :, i] = relu(W3 @ relu(W2 @ relu(W1 @ x[:, :, i] + b1) + b2) + b3).
    """
    w1, b1, w2, b2, w3, b3 = params
    B, cin, S = x.shape
    h1, h2, cout = w1.shape[0], w2.shape[0], w3.shape[0]
    out_dtype = x.dtype

    # Lane tile along S:
    #  * S < 128: block spans the full (small) S extent -> always legal.
    #  * S >= 128: multiple of 128 that does not exceed S; any remainder is a
    #    partial boundary block handled by Pallas (masked writes), avoiding
    #    pad / slice HBM copies in the wrapper.
    if S < 128:
        st = S
    else:
        st = max(128, min(_round_up(int(s_tile), 128), (S // 128) * 128))
    grid = (B, pl.cdiv(S, st))

    if mxu_dtype is not None:
        # Weights are tiny (~6 KiB): one-time cast is free.  x is cast inside
        # the kernel so no extra wrapper-side HBM pass is introduced.
        w1, w2, w3 = (w.astype(mxu_dtype) for w in (w1, w2, w3))

    in_specs = [
        pl.BlockSpec((1, cin, st), lambda b, s: (b, 0, s)),
        # Weights / biases are grid-constant: full blocks every step.
        pl.BlockSpec((h1, cin), lambda b, s: (0, 0)),
        pl.BlockSpec((h1, 1), lambda b, s: (0, 0)),
        pl.BlockSpec((h2, h1), lambda b, s: (0, 0)),
        pl.BlockSpec((h2, 1), lambda b, s: (0, 0)),
        pl.BlockSpec((cout, h2), lambda b, s: (0, 0)),
        pl.BlockSpec((cout, 1), lambda b, s: (0, 0)),
    ]
    out_specs = pl.BlockSpec((1, cout, st), lambda b, s: (b, 0, s))

    return pl.pallas_call(
        functools.partial(_fused_mlp_kernel, mxu_dtype=mxu_dtype),
        out_shape=jax.ShapeDtypeStruct((B, cout, S), out_dtype),
        grid_spec=pltpu.PrefetchScalarGridSpec(
            num_scalar_prefetch=0,
            grid=grid,
            in_specs=in_specs,
            out_specs=out_specs,
        ),
        compiler_params=pltpu.CompilerParams(
            dimension_semantics=("parallel", "parallel")),
    )(x, w1, b1, w2, b2, w3, b3)


def init_params(key, in_mlp, hid1, hid2, out_mlp, dtype=jnp.float32):
    """PyTorch-style Linear init (uniform +-1/sqrt(fan_in)).

    Weights stored PyTorch-style as [out, in]; biases as [out, 1] so they
    broadcast along the lane (S) axis inside the kernel.
    """
    ks = jax.random.split(key, 6)

    def lin(kw, kb, fi, fo):
        bound = 1.0 / float(fi) ** 0.5
        w = jax.random.uniform(kw, (fo, fi), dtype, -bound, bound)
        b = jax.random.uniform(kb, (fo, 1), dtype, -bound, bound)
        return w, b

    w1, b1 = lin(ks[0], ks[1], in_mlp, hid1)
    w2, b2 = lin(ks[2], ks[3], hid1, hid2)
    w3, b3 = lin(ks[4], ks[5], hid2, out_mlp)
    return (w1, b1, w2, b2, w3, b3)


def mlp_reference(x, params):
    """Pure-JAX reference of the PyTorch per-slice forward."""
    w1, b1, w2, b2, w3, b3 = params
    h = jnp.maximum(jnp.einsum('oi,bis->bos', w1, x) + b1[None], 0.0)
    h = jnp.maximum(jnp.einsum('oi,bis->bos', w2, h) + b2[None], 0.0)
    h = jnp.maximum(jnp.einsum('oi,bis->bos', w3, h) + b3[None], 0.0)
    return h


# TODO(synk): MLP_module's optional dropout / normalization / non-relu
# activation branches are not exercised by this instantiation and are not
# implemented here.

if __name__ == "__main__":
    B, in_mlp, S = 2, 16, 8
    hid1, hid2, out_mlp = 32, 32, 16

    key = jax.random.PRNGKey(0)
    kx, kp, kx2 = jax.random.split(key, 3)
    x = jax.random.normal(kx, (B, in_mlp, S), dtype=jnp.float32)
    params = init_params(kp, in_mlp, hid1, hid2, out_mlp)

    y_ref = mlp_reference(x, params)

    # f32 path: tight tolerance vs reference.
    fwd_f32 = jax.jit(functools.partial(mlp_forward, s_tile=512))
    y = jax.block_until_ready(fwd_f32(x, params))
    assert y.shape == (B, out_mlp, S), y.shape
    assert jnp.allclose(y, y_ref, atol=1e-4, rtol=1e-4), "f32 mismatch vs reference"

    # bf16-MXU path (f32 accumulation / bias / ReLU): loosened tolerance.
    fwd_bf16 = jax.jit(
        functools.partial(mlp_forward, s_tile=512, mxu_dtype=jnp.bfloat16))
    y16 = jax.block_until_ready(fwd_bf16(x, params))
    assert y16.shape == (B, out_mlp, S), y16.shape
    assert jnp.allclose(y16, y_ref, atol=5e-2, rtol=5e-2), "bf16 mismatch vs reference"

    # Ragged S (partial boundary lane tile) - exercised without pad/slice copies.
    S2 = 200
    x2 = jax.random.normal(kx2, (B, in_mlp, S2), dtype=jnp.float32)
    fwd_ragged = jax.jit(functools.partial(mlp_forward, s_tile=128))
    y2 = jax.block_until_ready(fwd_ragged(x2, params))
    assert y2.shape == (B, out_mlp, S2), y2.shape
    assert jnp.allclose(y2, mlp_reference(x2, params), atol=1e-4, rtol=1e-4), \
        "ragged-S mismatch vs reference"

    print("KERNEL_OK")
</pallas_src>

<mosaic_0001>
module attributes {stable_mosaic.version = 11 : i64} {
  func.func @_fused_mlp_kernel(%arg0: i32, %arg1: i32, %arg2: memref<1x16x8xf32, #tpu.memory_space<vmem>>, %arg3: memref<32x16xf32, #tpu.memory_space<vmem>>, %arg4: memref<32x1xf32, #tpu.memory_space<vmem>>, %arg5: memref<32x32xf32, #tpu.memory_space<vmem>>, %arg6: memref<32x1xf32, #tpu.memory_space<vmem>>, %arg7: memref<16x32xf32, #tpu.memory_space<vmem>>, %arg8: memref<16x1xf32, #tpu.memory_space<vmem>>, %arg9: memref<1x16x8xf32, #tpu.memory_space<vmem>>) attributes {dimension_semantics = [#tpu.dimension_semantics<parallel>, #tpu.dimension_semantics<parallel>], iteration_bounds = array<i64: 2, 1>, scalar_prefetch = 0 : i64, scratch_operands = 0 : i64, tpu.core_type = #tpu.core_type<tc>, window_params = [{transform_indices = @transform_0, window_bounds = array<i64: 1, 16, 8>}, {pipeline_mode = #tpu.pipeline_mode<synchronous>, transform_indices = @transform_1, window_bounds = array<i64: 32, 16>}, {pipeline_mode = #tpu.pipeline_mode<synchronous>, transform_indices = @transform_2, window_bounds = array<i64: 32, 1>}, {pipeline_mode = #tpu.pipeline_mode<synchronous>, transform_indices = @transform_3, window_bounds = array<i64: 32, 32>}, {pipeline_mode = #tpu.pipeline_mode<synchronous>, transform_indices = @transform_4, window_bounds = array<i64: 32, 1>}, {pipeline_mode = #tpu.pipeline_mode<synchronous>, transform_indices = @transform_5, window_bounds = array<i64: 16, 32>}, {pipeline_mode = #tpu.pipeline_mode<synchronous>, transform_indices = @transform_6, window_bounds = array<i64: 16, 1>}, {transform_indices = @transform_7, window_bounds = array<i64: 1, 16, 8>}]} {
    %c0 = arith.constant 0 : index
    %c0_0 = arith.constant 0 : index
    %c0_1 = arith.constant 0 : index
    %0 = vector.load %arg2[%c0, %c0_0, %c0_1] : memref<1x16x8xf32, #tpu.memory_space<vmem>>, vector<1x16x8xf32>
    %1 = vector.shape_cast %0 : vector<1x16x8xf32> to vector<16x8xf32>
    %c0_2 = arith.constant 0 : index
    %c0_3 = arith.constant 0 : index
    %2 = vector.load %arg3[%c0_2, %c0_3] : memref<32x16xf32, #tpu.memory_space<vmem>>, vector<32x16xf32>
    %cst = arith.constant dense<0.000000e+00> : vector<32x8xf32>
    %3 = tpu.matmul %2, %1, %cst {dimension_numbers = #tpu.dot_dimension_numbers<[1], [0], [0], [1], [0, 0, 1, 1], [], []>} : vector<32x16xf32>, vector<16x8xf32>, vector<32x8xf32> -> vector<32x8xf32>
    %c0_4 = arith.constant 0 : index
    %c0_5 = arith.constant 0 : index
    %4 = vector.load %arg4[%c0_4, %c0_5] : memref<32x1xf32, #tpu.memory_space<vmem>>, vector<32x1xf32>
    %5 = vector.broadcast %4 : vector<32x1xf32> to vector<32x8xf32>
    %6 = arith.addf %3, %5 : vector<32x8xf32>
    %cst_6 = arith.constant 0.000000e+00 : f32
    %7 = vector.broadcast %cst_6 : f32 to vector<32x8xf32>
    %8 = arith.maximumf %6, %7 : vector<32x8xf32>
    %c0_7 = arith.constant 0 : index
    %c0_8 = arith.constant 0 : index
    %9 = vector.load %arg5[%c0_7, %c0_8] : memref<32x32xf32, #tpu.memory_space<vmem>>, vector<32x32xf32>
    %cst_9 = arith.constant dense<0.000000e+00> : vector<32x8xf32>
    %10 = tpu.matmul %9, %8, %cst_9 {dimension_numbers = #tpu.dot_dimension_numbers<[1], [0], [0], [1], [0, 0, 1, 1], [], []>} : vector<32x32xf32>, vector<32x8xf32>, vector<32x8xf32> -> vector<32x8xf32>
    %c0_10 = arith.constant 0 : index
    %c0_11 = arith.constant 0 : index
    %11 = vector.load %arg6[%c0_10, %c0_11] : memref<32x1xf32, #tpu.memory_space<vmem>>, vector<32x1xf32>
    %12 = vector.broadcast %11 : vector<32x1xf32> to vector<32x8xf32>
    %13 = arith.addf %10, %12 : vector<32x8xf32>
    %cst_12 = arith.constant 0.000000e+00 : f32
    %14 = vector.broadcast %cst_12 : f32 to vector<32x8xf32>
    %15 = arith.maximumf %13, %14 : vector<32x8xf32>
    %c0_13 = arith.constant 0 : index
    %c0_14 = arith.constant 0 : index
    %16 = vector.load %arg7[%c0_13, %c0_14] : memref<16x32xf32, #tpu.memory_space<vmem>>, vector<16x32xf32>
    %cst_15 = arith.constant dense<0.000000e+00> : vector<16x8xf32>
    %17 = tpu.matmul %16, %15, %cst_15 {dimension_numbers = #tpu.dot_dimension_numbers<[1], [0], [0], [1], [0, 0, 1, 1], [], []>} : vector<16x32xf32>, vector<32x8xf32>, vector<16x8xf32> -> vector<16x8xf32>
    %c0_16 = arith.constant 0 : index
    %c0_17 = arith.constant 0 : index
    %18 = vector.load %arg8[%c0_16, %c0_17] : memref<16x1xf32, #tpu.memory_space<vmem>>, vector<16x1xf32>
    %19 = vector.broadcast %18 : vector<16x1xf32> to vector<16x8xf32>
    %20 = arith.addf %17, %19 : vector<16x8xf32>
    %cst_18 = arith.constant 0.000000e+00 : f32
    %21 = vector.broadcast %cst_18 : f32 to vector<16x8xf32>
    %22 = arith.maximumf %20, %21 : vector<16x8xf32>
    %c0_19 = arith.constant 0 : index
    %c0_20 = arith.constant 0 : index
    %c0_21 = arith.constant 0 : index
    %23 = vector.load %arg9[%c0_19, %c0_20, %c0_21] : memref<1x16x8xf32, #tpu.memory_space<vmem>>, vector<1x16x8xf32>
    %24 = vector.shape_cast %23 : vector<1x16x8xf32> to vector<16x8xf32>
    %25 = vector.shape_cast %22 : vector<16x8xf32> to vector<1x16x8xf32>
    tpu.vector_store %arg9[%c0_19, %c0_20, %c0_21], %25 {strides = array<i32>} : memref<1x16x8xf32, #tpu.memory_space<vmem>>, vector<1x16x8xf32>,
    return
  }
  func.func @transform_0(%arg0: i32, %arg1: i32) -> (i32, i32, i32) {
    %c0_i32 = arith.constant 0 : i32
    %c0_i32_0 = arith.constant 0 : i32
    return %arg0, %c0_i32, %arg1 : i32, i32, i32
  }
  func.func @transform_1(%arg0: i32, %arg1: i32) -> (i32, i32) {
    %c0_i32 = arith.constant 0 : i32
    %c0_i32_0 = arith.constant 0 : i32
    %c0_i32_1 = arith.constant 0 : i32
    return %c0_i32, %c0_i32_0 : i32, i32
  }
  func.func @transform_2(%arg0: i32, %arg1: i32) -> (i32, i32) {
    %c0_i32 = arith.constant 0 : i32
    %c0_i32_0 = arith.constant 0 : i32
    %c0_i32_1 = arith.constant 0 : i32
    return %c0_i32, %c0_i32_0 : i32, i32
  }
  func.func @transform_3(%arg0: i32, %arg1: i32) -> (i32, i32) {
    %c0_i32 = arith.constant 0 : i32
    %c0_i32_0 = arith.constant 0 : i32
    %c0_i32_1 = arith.constant 0 : i32
    return %c0_i32, %c0_i32_0 : i32, i32
  }
  func.func @transform_4(%arg0: i32, %arg1: i32) -> (i32, i32) {
    %c0_i32 = arith.constant 0 : i32
    %c0_i32_0 = arith.constant 0 : i32
    %c0_i32_1 = arith.constant 0 : i32
    return %c0_i32, %c0_i32_0 : i32, i32
  }
  func.func @transform_5(%arg0: i32, %arg1: i32) -> (i32, i32) {
    %c0_i32 = arith.constant 0 : i32
    %c0_i32_0 = arith.constant 0 : i32
    %c0_i32_1 = arith.constant 0 : i32
    return %c0_i32, %c0_i32_0 : i32, i32
  }
  func.func @transform_6(%arg0: i32, %arg1: i32) -> (i32, i32) {
    %c0_i32 = arith.constant 0 : i32
    %c0_i32_0 = arith.constant 0 : i32
    %c0_i32_1 = arith.constant 0 : i32
    return %c0_i32, %c0_i32_0 : i32, i32
  }
  func.func @transform_7(%arg0: i32, %arg1: i32) -> (i32, i32, i32) {
    %c0_i32 = arith.constant 0 : i32
    %c0_i32_0 = arith.constant 0 : i32
    return %arg0, %c0_i32, %arg1 : i32, i32, i32
  }
}

</mosaic_0001>

<llo_original>
// kernel: mlp_forward.1
$region0: #{mlp_forward.1}
  #allocation0 [shape = 'u32[]', space=smem, size = 0x4, offset = 0x4, fixed_abs, tag = 'smem constant byte address 0x4 - core index']
  #allocation1 [shape = 'u32[144,128]{1,0:T(1,128)}', space=vmem, size = 0x12000, scoped, tag = 'internal scratch']
  %s0 = inlined_call_operand.vmem [shape: f32[2,16,8], index: 0, kind: input, shape index: {}]
  %s1 = inlined_call_operand.vmem [shape: f32[32,16], index: 1, kind: input, shape index: {}]
  %s2 = inlined_call_operand.vmem [shape: f32[32,1], index: 2, kind: input, shape index: {}]
  %s3 = inlined_call_operand.vmem [shape: f32[32,32], index: 3, kind: input, shape index: {}]
  %s4 = inlined_call_operand.vmem [shape: f32[32,1], index: 4, kind: input, shape index: {}]
  %s5 = inlined_call_operand.vmem [shape: f32[16,32], index: 5, kind: input, shape index: {}]
  %s6 = inlined_call_operand.vmem [shape: f32[16,1], index: 6, kind: input, shape index: {}]
  %s7 = inlined_call_operand.vmem [shape: f32[2,16,8], index: 7, kind: output, shape index: {}]
  %s8 = sld [smem:[#allocation0]]
  $region61: #{mlp_forward.1} parent=0
    _
  %s10 = ssub.s32 1, %s8
  %s11 = scalar_select 0, %s10, %s8
  loop: start=0, step=1, limit=4
  $region2: #{mlp_forward.1} parent=0 // loop_pre_header
    _
  $region3: #{mlp_forward.1} parent=0 // loop_header
    %s13 = sphi 0, %s17
    %p14 = scmp.ge.s32.totalorder %s13, 4
    %s20 = sphi 0, %s32
    %s21 = sphi 0, %s28
    %s22 = sphi 0, %s20
    %s23 = sphi 0, %s21
    %s24 = sphi 0, %s22
    %s25 = sphi 0, %s23
    %s37 = sphi 0, %s39
    %s40 = sphi 0, %s37
    %s41 = sphi 0, %s40
    %s57 = sphi 0, %s41
    %s61 = sphi 0, %s61
    %s63 = sphi 0, %s61
    %s64 = sphi 0, %s63
    %s78 = sphi 0, %s64
    %s82 = sphi 0, %s82
    %s84 = sphi 0, %s82
    %s85 = sphi 0, %s84
    %s99 = sphi 0, %s85
    %s103 = sphi 0, %s103
    %s105 = sphi 0, %s103
    %s106 = sphi 0, %s105
    %s120 = sphi 0, %s106
    %s124 = sphi 0, %s124
    %s126 = sphi 0, %s124
    %s127 = sphi 0, %s126
    %s141 = sphi 0, %s127
    %s145 = sphi 0, %s145
    %s147 = sphi 0, %s145
    %s148 = sphi 0, %s147
    %s162 = sphi 0, %s148
    %s166 = sphi 0, %s166
    %s168 = sphi 0, %s166
    %s169 = sphi 0, %s168
    %s183 = sphi 0, %s169
    %s191 = sphi 0, %s193
    %s194 = sphi 0, %s191
    %s195 = sphi 0, %s194
    %s211 = sphi 0, %s195
  $region4: #{mlp_forward.1} parent=0 // loop_header_branch
    %16 = sbr.rel (%p14) target = $region8
  $region5: #{mlp_forward.1} parent=0 // loop_body
    %s18 = ssub.s32 %s13, 1
    %s19 = ssub.s32 %s13, 2
    %s26 = sadd.s32 1, %s21
    %p27 = scmp.ge.s32.totalorder %s26, 1
    %s28 = scalar_select %p27, 0, %s26
    %s29 = sadd.s32 1, %s20
    %s30 = scalar_select %p27, %s29, %s20
    %p31 = scmp.ge.s32.totalorder %s30, 2
    %s32 = scalar_select %p31, 0, %s30
    %s33 = ssub.s32 %s20, %s32
    %s34 = ssub.s32 %s21, %s28
    %s35 = sor.u32 %s33, %s34
    %p36 = scmp.eq.s32.totalorder %s35, 0
    %s38 = sadd.s32 %s37, 1
    %s39 = scalar_select %p36, %s37, %s38
    %p42 = pneg %p36
    %p43 = scmp.eq.s32.totalorder %s13, 1
    %p44 = por %p42, %p43
    %p45 = scmp.ne.s32.totalorder %s37, %s40
    %p46 = scmp.eq.s32.totalorder %s13, 0
    %p47 = por %p45, %p46
    %p48 = scmp.ne.s32.totalorder %s37, %s40
    %p49 = scmp.eq.s32.totalorder %s18, 1
    %p50 = por %p48, %p49
    %p51 = scmp.ne.s32.totalorder %s40, %s41
    %p52 = scmp.eq.s32.totalorder %s18, 0
    %p53 = por %p51, %p52
    %p54 = scmp.ne.s32.totalorder %s40, %s41
    %p55 = scmp.eq.s32.totalorder %s19, 1
    %p56 = por %p54, %p55
    %p58 = scmp.ne.s32.totalorder %s41, %s57
    %p59 = scmp.eq.s32.totalorder %s19, 0
    %p60 = por %p58, %p59
    %s62 = sadd.s32 %s61, 1
    %p65 = scmp.eq.s32.totalorder %s13, 1
    %p66 = scmp.ne.s32.totalorder %s61, %s63
    %p67 = scmp.eq.s32.totalorder %s13, 0
    %p68 = por %p66, %p67
    %p69 = scmp.ne.s32.totalorder %s61, %s63
    %p70 = scmp.eq.s32.totalorder %s18, 1
    %p71 = por %p69, %p70
    %p72 = scmp.ne.s32.totalorder %s63, %s64
    %p73 = scmp.eq.s32.totalorder %s18, 0
    %p74 = por %p72, %p73
    %p75 = scmp.ne.s32.totalorder %s63, %s64
    %p76 = scmp.eq.s32.totalorder %s19, 1
    %p77 = por %p75, %p76
    %p79 = scmp.ne.s32.totalorder %s64, %s78
    %p80 = scmp.eq.s32.totalorder %s19, 0
    %p81 = por %p79, %p80
    %s83 = sadd.s32 %s82, 1
    %p86 = scmp.eq.s32.totalorder %s13, 1
    %p87 = scmp.ne.s32.totalorder %s82, %s84
    %p88 = scmp.eq.s32.totalorder %s13, 0
    %p89 = por %p87, %p88
    %p90 = scmp.ne.s32.totalorder %s82, %s84
    %p91 = scmp.eq.s32.totalorder %s18, 1
    %p92 = por %p90, %p91
    %p93 = scmp.ne.s32.totalorder %s84, %s85
    %p94 = scmp.eq.s32.totalorder %s18, 0
    %p95 = por %p93, %p94
    %p96 = scmp.ne.s32.totalorder %s84, %s85
    %p97 = scmp.eq.s32.totalorder %s19, 1
    %p98 = por %p96, %p97
    %p100 = scmp.ne.s32.totalorder %s85, %s99
    %p101 = scmp.eq.s32.totalorder %s19, 0
    %p102 = por %p100, %p101
    %s104 = sadd.s32 %s103, 1
    %p107 = scmp.eq.s32.totalorder %s13, 1
    %p108 = scmp.ne.s32.totalorder %s103, %s105
    %p109 = scmp.eq.s32.totalorder %s13, 0
    %p110 = por %p108, %p109
    %p111 = scmp.ne.s32.totalorder %s103, %s105
    %p112 = scmp.eq.s32.totalorder %s18, 1
    %p113 = por %p111, %p112
    %p114 = scmp.ne.s32.totalorder %s105, %s106
    %p115 = scmp.eq.s32.totalorder %s18, 0
    %p116 = por %p114, %p115
    %p117 = scmp.ne.s32.totalorder %s105, %s106
    %p118 = scmp.eq.s32.totalorder %s19, 1
    %p119 = por %p117, %p118
    %p121 = scmp.ne.s32.totalorder %s106, %s120
    %p122 = scmp.eq.s32.totalorder %s19, 0
    %p123 = por %p121, %p122
    %s125 = sadd.s32 %s124, 1
    %p128 = scmp.eq.s32.totalorder %s13, 1
    %p129 = scmp.ne.s32.totalorder %s124, %s126
    %p130 = scmp.eq.s32.totalorder %s13, 0
    %p131 = por %p129, %p130
    %p132 = scmp.ne.s32.totalorder %s124, %s126
    %p133 = scmp.eq.s32.totalorder %s18, 1
    %p134 = por %p132, %p133
    %p135 = scmp.ne.s32.totalorder %s126, %s127
    %p136 = scmp.eq.s32.totalorder %s18, 0
    %p137 = por %p135, %p136
    %p138 = scmp.ne.s32.totalorder %s126, %s127
    %p139 = scmp.eq.s32.totalorder %s19, 1
    %p140 = por %p138, %p139
    %p142 = scmp.ne.s32.totalorder %s127, %s141
    %p143 = scmp.eq.s32.totalorder %s19, 0
    %p144 = por %p142, %p143
    %s146 = sadd.s32 %s145, 1
    %p149 = scmp.eq.s32.totalorder %s13, 1
    %p150 = scmp.ne.s32.totalorder %s145, %s147
    %p151 = scmp.eq.s32.totalorder %s13, 0
    %p152 = por %p150, %p151
    %p153 = scmp.ne.s32.totalorder %s145, %s147
    %p154 = scmp.eq.s32.totalorder %s18, 1
    %p155 = por %p153, %p154
    %p156 = scmp.ne.s32.totalorder %s147, %s148
    %p157 = scmp.eq.s32.totalorder %s18, 0
    %p158 = por %p156, %p157
    %p159 = scmp.ne.s32.totalorder %s147, %s148
    %p160 = scmp.eq.s32.totalorder %s19, 1
    %p161 = por %p159, %p160
    %p163 = scmp.ne.s32.totalorder %s148, %s162
    %p164 = scmp.eq.s32.totalorder %s19, 0
    %p165 = por %p163, %p164
    %s167 = sadd.s32 %s166, 1
    %p170 = scmp.eq.s32.totalorder %s13, 1
    %p171 = scmp.ne.s32.totalorder %s166, %s168
    %p172 = scmp.eq.s32.totalorder %s13, 0
    %p173 = por %p171, %p172
    %p174 = scmp.ne.s32.totalorder %s166, %s168
    %p175 = scmp.eq.s32.totalorder %s18, 1
    %p176 = por %p174, %p175
    %p177 = scmp.ne.s32.totalorder %s168, %s169
    %p178 = scmp.eq.s32.totalorder %s18, 0
    %p179 = por %p177, %p178
    %p180 = scmp.ne.s32.totalorder %s168, %s169
    %p181 = scmp.eq.s32.totalorder %s19, 1
    %p182 = por %p180, %p181
    %p184 = scmp.ne.s32.totalorder %s169, %s183
    %p185 = scmp.eq.s32.totalorder %s19, 0
    %p186 = por %p184, %p185
    %s187 = ssub.s32 %s20, %s32
    %s188 = ssub.s32 %s21, %s28
    %s189 = sor.u32 %s187, %s188
    %p190 = scmp.eq.s32.totalorder %s189, 0
    %s192 = sadd.s32 %s191, 1
    %s193 = scalar_select %p190, %s191, %s192
    %p196 = pneg %p190
    %p197 = scmp.eq.s32.totalorder %s13, 1
    %p198 = por %p196, %p197
    %p199 = scmp.ne.s32.totalorder %s191, %s194
    %p200 = scmp.eq.s32.totalorder %s13, 0
    %p201 = por %p199, %p200
    %p202 = scmp.ne.s32.totalorder %s191, %s194
    %p203 = scmp.eq.s32.totalorder %s18, 1
    %p204 = por %p202, %p203
    %p205 = scmp.ne.s32.totalorder %s194, %s195
    %p206 = scmp.eq.s32.totalorder %s18, 0
    %p207 = por %p205, %p206
    %p208 = scmp.ne.s32.totalorder %s194, %s195
    %p209 = scmp.eq.s32.totalorder %s19, 1
    %p210 = por %p208, %p209
    %p212 = scmp.ne.s32.totalorder %s195, %s211
    %p213 = scmp.eq.s32.totalorder %s19, 0
    %p214 = por %p212, %p213
    %p215 = scmp.le.s32.totalorder 1, %s13
    %p216 = scmp.lt.s32.totalorder %s13, 3
    %p217 = pnand %p215, %p216
    %p218 = pneg %p217
    // Predicated region
    $region9: #{mlp_forward.1} parent=5 // pred_check
      _
    $region10: #{mlp_forward.1} parent=5 // pred_check_branch
      %220 = sbr.rel (%p217) target = $region12
    $region11: #{mlp_forward.1} parent=5 // pred_region
      %s221 = ssub.s32 %s13, 1
      // Predicated region
      $region13: #{mlp_forward.1} parent=11 // pred_check
        %p222 = pneg %p74
      $region14: #{mlp_forward.1} parent=11 // pred_check_branch
        %224 = sbr.rel (%p222) target = $region16
      $region15: #{mlp_forward.1} parent=11 // pred_region
        _
      $region16: #{mlp_forward.1} parent=11 // pred_fallthru
        _
      // Predicated region
      $region17: #{mlp_forward.1} parent=11 // pred_check
        %p225 = pneg %p95
      $region18: #{mlp_forward.1} parent=11 // pred_check_branch
        %227 = sbr.rel (%p225) target = $region20
      $region19: #{mlp_forward.1} parent=11 // pred_region
        _
      $region20: #{mlp_forward.1} parent=11 // pred_fallthru
        _
      // Predicated region
      $region21: #{mlp_forward.1} parent=11 // pred_check
        %p228 = pneg %p116
      $region22: #{mlp_forward.1} parent=11 // pred_check_branch
        %230 = sbr.rel (%p228) target = $region24
      $region23: #{mlp_forward.1} parent=11 // pred_region
        _
      $region24: #{mlp_forward.1} parent=11 // pred_fallthru
        _
      // Predicated region
      $region25: #{mlp_forward.1} parent=11 // pred_check
        %p231 = pneg %p137
      $region26: #{mlp_forward.1} parent=11 // pred_check_branch
        %233 = sbr.rel (%p231) target = $region28
      $region27: #{mlp_forward.1} parent=11 // pred_region
        _
      $region28: #{mlp_forward.1} parent=11 // pred_fallthru
        _
      // Predicated region
      $region29: #{mlp_forward.1} parent=11 // pred_check
        %p234 = pneg %p158
      $region30: #{mlp_forward.1} parent=11 // pred_check_branch
        %236 = sbr.rel (%p234) target = $region32
      $region31: #{mlp_forward.1} parent=11 // pred_region
        _
      $region32: #{mlp_forward.1} parent=11 // pred_fallthru
        _
      // Predicated region
      $region33: #{mlp_forward.1} parent=11 // pred_check
        %p237 = pneg %p179
      $region34: #{mlp_forward.1} parent=11 // pred_check_branch
        %239 = sbr.rel (%p237) target = $region36
      $region35: #{mlp_forward.1} parent=11 // pred_region
        _
      $region36: #{mlp_forward.1} parent=11 // pred_fallthru
        _
    $region12: #{mlp_forward.1} parent=5 // pred_fallthru
      _
    %p240 = scmp.lt.s32.totalorder %s13, 2
    // Predicated region
    $region37: #{mlp_forward.1} parent=5 // pred_check
      %p241 = pneg %p240
    $region38: #{mlp_forward.1} parent=5 // pred_check_branch
      %243 = sbr.rel (%p241) target = $region40
    $region39: #{mlp_forward.1} parent=5 // pred_region
      // Predicated region
      $region41: #{mlp_forward.1} parent=39 // pred_check
        %p244 = pneg %p47
      $region42: #{mlp_forward.1} parent=39 // pred_check_branch
        %246 = sbr.rel (%p244) target = $region44
      $region43: #{mlp_forward.1} parent=39 // pred_region
        %p247 = scmp.lt.s32.totalorder %s20, 1
        %s248 = scalar_select %p247, %s20, 1
        %p249 = scmp.lt.s32.totalorder %s21, 0
        %s250 = scalar_select %p249, %s21, 0
        %s251 = smul.addr %s248, 2
        %s252 = sadd.s32 %s250, %s251
        %s253 = smul.addr %s252, 8
        %s254 = scalar_lea.vmem %s0, %s253
      $region44: #{mlp_forward.1} parent=39 // pred_fallthru
        _
    $region40: #{mlp_forward.1} parent=5 // pred_fallthru
      _
    %p255 = scmp.le.s32.totalorder 1, %s13
    %p256 = scmp.lt.s32.totalorder %s13, 3
    %p257 = pnand %p255, %p256
    %p258 = pneg %p257
    // Predicated region
    $region45: #{mlp_forward.1} parent=5 // pred_check
      _
    $region46: #{mlp_forward.1} parent=5 // pred_check_branch
      %260 = sbr.rel (%p257) target = $region48
    $region47: #{mlp_forward.1} parent=5 // pred_region
      %s261 = ssub.s32 %s13, 1
      %p262 = scmp.lt.s32.totalorder %s22, 1
      %s263 = scalar_select %p262, %s22, 1
      %p264 = scmp.lt.s32.totalorder %s23, 0
      %s265 = scalar_select %p264, %s23, 0
      %s266 = smul.addr %s263, 2
      %s267 = sadd.s32 %s265, %s266
      %s268 = smul.addr %s267, 8
      %s269 = scalar_lea.vmem %s0, %s268
      %p270 = pneg %p53
      %p271 = pneg %p50
      %p272 = pneg %p74
      %p273 = pneg %p71
      %p274 = pneg %p95
      %p275 = pneg %p92
      %p276 = pneg %p116
      %p277 = pneg %p113
      %p278 = pneg %p137
      %p279 = pneg %p134
      %p280 = pneg %p158
      %p281 = pneg %p155
      %p282 = pneg %p179
      %p283 = pneg %p176
      %p284 = pneg %p207
      %p285 = pneg %p204
      %p286 = scmp.lt.s32.totalorder %s22, 1
      %s287 = scalar_select %p286, %s22, 1
      %p288 = scmp.lt.s32.totalorder %s23, 0
      %s289 = scalar_select %p288, %s23, 0
      %s290 = smul.addr %s287, 2
      %s291 = sadd.s32 %s289, %s290
      %s292 = smul.addr %s291, 8
      %s293 = scalar_lea.vmem %s7, %s292
      %p294 = scmp.lt.s32.totalorder %s22, 1
      %s295 = scalar_select %p294, %s22, 1
      %p296 = scmp.lt.s32.totalorder %s23, 0
      %s297 = scalar_select %p296, %s23, 0
      %s298 = smul.addr %s295, 2
      %s299 = sadd.s32 %s297, %s298
      %s300 = smul.addr %s299, 8
      %s301 = scalar_lea.vmem %s0, %s300
      %p302 = scmp.lt.s32.totalorder %s22, 1
      %s303 = scalar_select %p302, %s22, 1
      %p304 = scmp.lt.s32.totalorder %s23, 0
      %s305 = scalar_select %p304, %s23, 0
      %s306 = smul.addr %s303, 2
      %s307 = sadd.s32 %s305, %s306
      %s308 = smul.addr %s307, 8
      %s309 = scalar_lea.vmem %s7, %s308
      %v310 = vld [vmem:[%s301] sm:$0xff]
      %v311 = vld [vmem:[%s301 + $0x8] sm:$0xff]
      %v312 = vld [vmem:[%s1] sm:$0xff]
      %v313 = vld [vmem:[%s1 + $0x8] sm:$0xff]
      %v314 = vld [vmem:[%s1 + $0x10] sm:$0xff]
      %v315 = vld [vmem:[%s1 + $0x18] sm:$0xff]
      %v316 = vld [vmem:[%s2] sm:$0xff]
      %v317 = vld [vmem:[%s2 + $0x8] sm:$0xff]
      %v318 = vld [vmem:[%s2 + $0x10] sm:$0xff]
      %v319 = vld [vmem:[%s2 + $0x18] sm:$0xff]
      %321 = vset.pattern.permute.xlu0 0
      %322 = vperm.xlu0 %321, %v316
      %v323 = vpop.permute.xlu0 %322
      %326 = vset.pattern.permute.xlu0 0
      %327 = vperm.xlu0 %326, %v317
      %v328 = vpop.permute.xlu0 %327
      %331 = vset.pattern.permute.xlu0 0
      %332 = vperm.xlu0 %331, %v318
      %v333 = vpop.permute.xlu0 %332
      %336 = vset.pattern.permute.xlu0 0
      %337 = vperm.xlu0 %336, %v319
      %v338 = vpop.permute.xlu0 %337
      %vm340 = vcmask 130048
      %v342 = vsel %vm340, %v312, 0
      %v345 = vsel %vm340, %v313, 0
      %v348 = vsel %vm340, %v314, 0
      %v351 = vsel %vm340, %v315, 0
      %353 = vmatprep.subr.mxu0 0.0
      %354 = vmatpush1.msra.mxu0 %v310
      %355 = vmatprep.subr.mxu0 0.0
      %356 = vmatpush1.msra.mxu0 %v311
      %357 = vmatprep.subr.mxu0 0.0
      %358 = vmatpush1.msra.mxu0 0.0
      %359 = vmatprep.subr.mxu0 0.0
      %360 = vmatpush1.msra.mxu0 0.0
      %361 = vmatprep.subr.mxu0 0.0
      %362 = vmatpush1.msra.mxu0 0.0
      %363 = vmatprep.subr.mxu0 0.0
      %364 = vmatpush1.msra.mxu0 0.0
      %365 = vmatprep.subr.mxu0 0.0
      %366 = vmatpush1.msra.mxu0 0.0
      %367 = vmatprep.subr.mxu0 0.0
      %368 = vmatpush1.msra.mxu0 0.0
      %369 = vmatprep.subr.mxu0 0.0
      %370 = vmatpush1.msra.mxu0 0.0
      %371 = vmatprep.subr.mxu0 0.0
      %372 = vmatpush1.msra.mxu0 0.0
      %373 = vmatprep.subr.mxu0 0.0
      %374 = vmatpush1.msra.mxu0 0.0
      %375 = vmatprep.subr.mxu0 0.0
      %376 = vmatpush1.msra.mxu0 0.0
      %377 = vmatprep.subr.mxu0 0.0
      %378 = vmatpush1.msra.mxu0 0.0
      %379 = vmatprep.subr.mxu0 0.0
      %380 = vmatpush1.msra.mxu0 0.0
      %381 = vmatprep.subr.mxu0 0.0
      %382 = vmatpush1.msra.mxu0 0.0
      %383 = vmatprep.subr.mxu0 0.0
      %384 = vmatpush1.msra.mxu0 0.0
      %385 = vmatprep.subr.mxu0 0.0
      %386 = vmatpush1.msra.mxu0 0.0
      %387 = vmatprep.subr.mxu0 0.0
      %388 = vmatpush1.msra.mxu0 0.0
      %389 = vmatprep.subr.mxu0 0.0
      %390 = vmatpush1.msra.mxu0 0.0
      %391 = vmatprep.subr.mxu0 0.0
      %392 = vmatpush1.msra.mxu0 0.0
      %393 = vmatprep.subr.mxu0 0.0
      %394 = vmatpush1.msra.mxu0 0.0
      %395 = vmatprep.subr.mxu0 0.0
      %396 = vmatpush1.msra.mxu0 0.0
      %397 = vmatprep.subr.mxu0 0.0
      %398 = vmatpush1.msra.mxu0 0.0
      %399 = vmatprep.subr.mxu0 0.0
      %400 = vmatpush1.msra.mxu0 0.0
      %401 = vmatprep.subr.mxu0 0.0
      %402 = vmatpush1.msra.mxu0 0.0
      %403 = vmatprep.subr.mxu0 0.0
      %404 = vmatpush1.msra.mxu0 0.0
      %405 = vmatprep.subr.mxu0 0.0
      %406 = vmatpush1.msra.mxu0 0.0
      %407 = vmatprep.subr.mxu0 0.0
      %408 = vmatpush1.msra.mxu0 0.0
      %409 = vmatprep.subr.mxu0 0.0
      %410 = vmatpush1.msra.mxu0 0.0
      %411 = vmatprep.subr.mxu0 0.0
      %412 = vmatpush1.msra.mxu0 0.0
      %413 = vmatprep.subr.mxu0 0.0
      %414 = vmatpush1.msra.mxu0 0.0
      %415 = vmatprep.subr.mxu0 0.0
      %416 = vmatpush1.msra.mxu0 0.0
      %417 = vmatprep.mubr.f32.mxu0 0.0
      %418 = vmatmul.mubr.f32.gmra.mrb[0].mxu0 %v342
      %v419 = vpop.f32.mrb[0].mxu0
      %v420 = vadd.f32 %v323, %v419
      %v421 = vpop.f32.mrb[0].mxu0
      %422 = vmatprep.mubr.f32.mxu0 0.0
      %423 = vmatmul.mubr.f32.gmra.mrb[0].mxu0 %v345
      %v424 = vpop.f32.mrb[0].mxu0
      %v425 = vadd.f32 %v328, %v424
      %v426 = vpop.f32.mrb[0].mxu0
      %427 = vmatprep.mubr.f32.mxu0 0.0
      %428 = vmatmul.mubr.f32.gmra.mrb[0].mxu0 %v348
      %v429 = vpop.f32.mrb[0].mxu0
      %v430 = vadd.f32 %v333, %v429
      %v431 = vpop.f32.mrb[0].mxu0
      %432 = vmatprep.mubr.f32.mxu0 0.0
      %433 = vmatmul.mubr.f32.gmra.mrb[0].mxu0 %v351
      %v434 = vpop.f32.mrb[0].mxu0
      %v435 = vadd.f32 %v338, %v434
      %v436 = vpop.f32.mrb[0].mxu0
      %437 = vdwg.mxu0
      %v438 = vmax.f32 %v420, 0.0
      %v439 = vmax.f32 %v425, 0.0
      %v440 = vmax.f32 %v430, 0.0
      %v441 = vmax.f32 %v435, 0.0
      %v442 = vld [vmem:[%s3] sm:$0xff]
      %v443 = vld [vmem:[%s3 + $0x8] sm:$0xff]
      %v444 = vld [vmem:[%s3 + $0x10] sm:$0xff]
      %v445 = vld [vmem:[%s3 + $0x18] sm:$0xff]
      %v446 = vld [vmem:[%s4] sm:$0xff]
      %v447 = vld [vmem:[%s4 + $0x8] sm:$0xff]
      %v448 = vld [vmem:[%s4 + $0x10] sm:$0xff]
      %v449 = vld [vmem:[%s4 + $0x18] sm:$0xff]
      %451 = vset.pattern.permute.xlu0 0
      %452 = vperm.xlu0 %451, %v446
      %v453 = vpop.permute.xlu0 %452
      %456 = vset.pattern.permute.xlu0 0
      %457 = vperm.xlu0 %456, %v447
      %v458 = vpop.permute.xlu0 %457
      %461 = vset.pattern.permute.xlu0 0
      %462 = vperm.xlu0 %461, %v448
      %v463 = vpop.permute.xlu0 %462
      %466 = vset.pattern.permute.xlu0 0
      %467 = vperm.xlu0 %466, %v449
      %v468 = vpop.permute.xlu0 %467
      %vm470 = vcmask 261120
      %v472 = vsel %vm470, %v442, 0
      %v475 = vsel %vm470, %v443, 0
      %v478 = vsel %vm470, %v444, 0
      %v481 = vsel %vm470, %v445, 0
      %483 = vmatprep.subr.mxu0 0.0
      %484 = vmatpush1.msra.mxu0 %v438
      %485 = vmatprep.subr.mxu0 0.0
      %486 = vmatpush1.msra.mxu0 %v439
      %487 = vmatprep.subr.mxu0 0.0
      %488 = vmatpush1.msra.mxu0 %v440
      %489 = vmatprep.subr.mxu0 0.0
      %490 = vmatpush1.msra.mxu0 %v441
      %491 = vmatprep.subr.mxu0 0.0
      %492 = vmatpush1.msra.mxu0 0.0
      %493 = vmatprep.subr.mxu0 0.0
      %494 = vmatpush1.msra.mxu0 0.0
      %495 = vmatprep.subr.mxu0 0.0
      %496 = vmatpush1.msra.mxu0 0.0
      %497 = vmatprep.subr.mxu0 0.0
      %498 = vmatpush1.msra.mxu0 0.0
      %499 = vmatprep.subr.mxu0 0.0
      %500 = vmatpush1.msra.mxu0 0.0
      %501 = vmatprep.subr.mxu0 0.0
      %502 = vmatpush1.msra.mxu0 0.0
      %503 = vmatprep.subr.mxu0 0.0
      %504 = vmatpush1.msra.mxu0 0.0
      %505 = vmatprep.subr.mxu0 0.0
      %506 = vmatpush1.msra.mxu0 0.0
      %507 = vmatprep.subr.mxu0 0.0
      %508 = vmatpush1.msra.mxu0 0.0
      %509 = vmatprep.subr.mxu0 0.0
      %510 = vmatpush1.msra.mxu0 0.0
      %511 = vmatprep.subr.mxu0 0.0
      %512 = vmatpush1.msra.mxu0 0.0
      %513 = vmatprep.subr.mxu0 0.0
      %514 = vmatpush1.msra.mxu0 0.0
      %515 = vmatprep.subr.mxu0 0.0
      %516 = vmatpush1.msra.mxu0 0.0
      %517 = vmatprep.subr.mxu0 0.0
      %518 = vmatpush1.msra.mxu0 0.0
      %519 = vmatprep.subr.mxu0 0.0
      %520 = vmatpush1.msra.mxu0 0.0
      %521 = vmatprep.subr.mxu0 0.0
      %522 = vmatpush1.msra.mxu0 0.0
      %523 = vmatprep.subr.mxu0 0.0
      %524 = vmatpush1.msra.mxu0 0.0
      %525 = vmatprep.subr.mxu0 0.0
      %526 = vmatpush1.msra.mxu0 0.0
      %527 = vmatprep.subr.mxu0 0.0
      %528 = vmatpush1.msra.mxu0 0.0
      %529 = vmatprep.subr.mxu0 0.0
      %530 = vmatpush1.msra.mxu0 0.0
      %531 = vmatprep.subr.mxu0 0.0
      %532 = vmatpush1.msra.mxu0 0.0
      %533 = vmatprep.subr.mxu0 0.0
      %534 = vmatpush1.msra.mxu0 0.0
      %535 = vmatprep.subr.mxu0 0.0
      %536 = vmatpush1.msra.mxu0 0.0
      %537 = vmatprep.subr.mxu0 0.0
      %538 = vmatpush1.msra.mxu0 0.0
      %539 = vmatprep.subr.mxu0 0.0
      %540 = vmatpush1.msra.mxu0 0.0
      %541 = vmatprep.subr.mxu0 0.0
      %542 = vmatpush1.msra.mxu0 0.0
      %543 = vmatprep.subr.mxu0 0.0
      %544 = vmatpush1.msra.mxu0 0.0
      %545 = vmatprep.subr.mxu0 0.0
      %546 = vmatpush1.msra.mxu0 0.0
      %547 = vmatprep.mubr.f32.mxu0 0.0
      %548 = vmatmul.mubr.f32.gmra.mrb[0].mxu0 %v472
      %v549 = vpop.f32.mrb[0].mxu0
      %v550 = vadd.f32 %v453, %v549
      %v551 = vpop.f32.mrb[0].mxu0
      %552 = vmatprep.mubr.f32.mxu0 0.0
      %553 = vmatmul.mubr.f32.gmra.mrb[0].mxu0 %v475
      %v554 = vpop.f32.mrb[0].mxu0
      %v555 = vadd.f32 %v458, %v554
      %v556 = vpop.f32.mrb[0].mxu0
      %557 = vmatprep.mubr.f32.mxu0 0.0
      %558 = vmatmul.mubr.f32.gmra.mrb[0].mxu0 %v478
      %v559 = vpop.f32.mrb[0].mxu0
      %v560 = vadd.f32 %v463, %v559
      %v561 = vpop.f32.mrb[0].mxu0
      %562 = vmatprep.mubr.f32.mxu0 0.0
      %563 = vmatmul.mubr.f32.gmra.mrb[0].mxu0 %v481
      %v564 = vpop.f32.mrb[0].mxu0
      %v565 = vadd.f32 %v468, %v564
      %v566 = vpop.f32.mrb[0].mxu0
      %567 = vdwg.mxu0
      %v568 = vmax.f32 %v550, 0.0
      %v569 = vmax.f32 %v555, 0.0
      %v570 = vmax.f32 %v560, 0.0
      %v571 = vmax.f32 %v565, 0.0
      %v572 = vld [vmem:[%s5] sm:$0xff]
      %v573 = vld [vmem:[%s5 + $0x8] sm:$0xff]
      %v574 = vld [vmem:[%s6] sm:$0xff]
      %v575 = vld [vmem:[%s6 + $0x8] sm:$0xff]
      %577 = vset.pattern.permute.xlu0 0
      %578 = vperm.xlu0 %577, %v574
      %v579 = vpop.permute.xlu0 %578
      %582 = vset.pattern.permute.xlu0 0
      %583 = vperm.xlu0 %582, %v575
      %v584 = vpop.permute.xlu0 %583
      %v587 = vsel %vm470, %v572, 0
      %v590 = vsel %vm470, %v573, 0
      %592 = vmatprep.subr.mxu0 0.0
      %593 = vmatpush1.msra.mxu0 %v568
      %594 = vmatprep.subr.mxu0 0.0
      %595 = vmatpush1.msra.mxu0 %v569
      %596 = vmatprep.subr.mxu0 0.0
      %597 = vmatpush1.msra.mxu0 %v570
      %598 = vmatprep.subr.mxu0 0.0
      %599 = vmatpush1.msra.mxu0 %v571
      %600 = vmatprep.subr.mxu0 0.0
      %601 = vmatpush1.msra.mxu0 0.0
      %602 = vmatprep.subr.mxu0 0.0
      %603 = vmatpush1.msra.mxu0 0.0
      %604 = vmatprep.subr.mxu0 0.0
      %605 = vmatpush1.msra.mxu0 0.0
      %606 = vmatprep.subr.mxu0 0.0
      %607 = vmatpush1.msra.mxu0 0.0
      %608 = vmatprep.subr.mxu0 0.0
      %609 = vmatpush1.msra.mxu0 0.0
      %610 = vmatprep.subr.mxu0 0.0
      %611 = vmatpush1.msra.mxu0 0.0
      %612 = vmatprep.subr.mxu0 0.0
      %613 = vmatpush1.msra.mxu0 0.0
      %614 = vmatprep.subr.mxu0 0.0
      %615 = vmatpush1.msra.mxu0 0.0
      %616 = vmatprep.subr.mxu0 0.0
      %617 = vmatpush1.msra.mxu0 0.0
      %618 = vmatprep.subr.mxu0 0.0
      %619 = vmatpush1.msra.mxu0 0.0
      %620 = vmatprep.subr.mxu0 0.0
      %621 = vmatpush1.msra.mxu0 0.0
      %622 = vmatprep.subr.mxu0 0.0
      %623 = vmatpush1.msra.mxu0 0.0
      %624 = vmatprep.subr.mxu0 0.0
      %625 = vmatpush1.msra.mxu0 0.0
      %626 = vmatprep.subr.mxu0 0.0
      %627 = vmatpush1.msra.mxu0 0.0
      %628 = vmatprep.subr.mxu0 0.0
      %629 = vmatpush1.msra.mxu0 0.0
      %630 = vmatprep.subr.mxu0 0.0
      %631 = vmatpush1.msra.mxu0 0.0
      %632 = vmatprep.subr.mxu0 0.0
      %633 = vmatpush1.msra.mxu0 0.0
      %634 = vmatprep.subr.mxu0 0.0
      %635 = vmatpush1.msra.mxu0 0.0
      %636 = vmatprep.subr.mxu0 0.0
      %637 = vmatpush1.msra.mxu0 0.0
      %638 = vmatprep.subr.mxu0 0.0
      %639 = vmatpush1.msra.mxu0 0.0
      %640 = vmatprep.subr.mxu0 0.0
      %641 = vmatpush1.msra.mxu0 0.0
      %642 = vmatprep.subr.mxu0 0.0
      %643 = vmatpush1.msra.mxu0 0.0
      %644 = vmatprep.subr.mxu0 0.0
      %645 = vmatpush1.msra.mxu0 0.0
      %646 = vmatprep.subr.mxu0 0.0
      %647 = vmatpush1.msra.mxu0 0.0
      %648 = vmatprep.subr.mxu0 0.0
      %649 = vmatpush1.msra.mxu0 0.0
      %650 = vmatprep.subr.mxu0 0.0
      %651 = vmatpush1.msra.mxu0 0.0
      %652 = vmatprep.subr.mxu0 0.0
      %653 = vmatpush1.msra.mxu0 0.0
      %654 = vmatprep.subr.mxu0 0.0
      %655 = vmatpush1.msra.mxu0 0.0
      %656 = vmatprep.mubr.f32.mxu0 0.0
      %657 = vmatmul.mubr.f32.gmra.mrb[0].mxu0 %v587
      %v658 = vpop.f32.mrb[0].mxu0
      %v659 = vadd.f32 %v579, %v658
      %v660 = vpop.f32.mrb[0].mxu0
      %661 = vmatprep.mubr.f32.mxu0 0.0
      %662 = vmatmul.mubr.f32.gmra.mrb[0].mxu0 %v590
      %v663 = vpop.f32.mrb[0].mxu0
      %v664 = vadd.f32 %v584, %v663
      %v665 = vpop.f32.mrb[0].mxu0
      %666 = vdwg.mxu0
      %v667 = vmax.f32 %v659, 0.0
      %v668 = vmax.f32 %v664, 0.0
      %vm669 = vcmask 64512
      %670 = vst.msk [vmem:[%s309] sm:$0xff] %vm669, %v667
      %671 = vst.msk [vmem:[%s309 + $0x8] sm:$0xff] %vm669, %v668
      %p672 = scmp.lt.s32.totalorder %s22, 1
      %s673 = scalar_select %p672, %s22, 1
      %p674 = scmp.lt.s32.totalorder %s23, 0
      %s675 = scalar_select %p674, %s23, 0
      %s676 = smul.addr %s673, 2
      %s677 = sadd.s32 %s675, %s676
      %s678 = smul.addr %s677, 8
      %s679 = scalar_lea.vmem %s7, %s678
      // Predicated region
      $region49: #{mlp_forward.1} parent=47 // pred_check
        %p680 = pneg %p204
      $region50: #{mlp_forward.1} parent=47 // pred_check_branch
        %682 = sbr.rel (%p680) target = $region52
      $region51: #{mlp_forward.1} parent=47 // pred_region
        _
      $region52: #{mlp_forward.1} parent=47 // pred_fallthru
        _
    $region48: #{mlp_forward.1} parent=5 // pred_fallthru
      _
    %p683 = scmp.le.s32.totalorder 2, %s13
    // Predicated region
    $region53: #{mlp_forward.1} parent=5 // pred_check
      %p684 = pneg %p683
    $region54: #{mlp_forward.1} parent=5 // pred_check_branch
      %686 = sbr.rel (%p684) target = $region56
    $region55: #{mlp_forward.1} parent=5 // pred_region
      %s687 = ssub.s32 %s13, 2
      // Predicated region
      $region57: #{mlp_forward.1} parent=55 // pred_check
        %p688 = pneg %p210
      $region58: #{mlp_forward.1} parent=55 // pred_check_branch
        %690 = sbr.rel (%p688) target = $region60
      $region59: #{mlp_forward.1} parent=55 // pred_region
        %p691 = scmp.lt.s32.totalorder %s24, 1
        %s692 = scalar_select %p691, %s24, 1
        %p693 = scmp.lt.s32.totalorder %s25, 0
        %s694 = scalar_select %p693, %s25, 0
        %s695 = smul.addr %s692, 2
        %s696 = sadd.s32 %s694, %s695
        %s697 = smul.addr %s696, 8
        %s698 = scalar_lea.vmem %s7, %s697
      $region60: #{mlp_forward.1} parent=55 // pred_fallthru
        _
    $region56: #{mlp_forward.1} parent=5 // pred_fallthru
      _
  $region6: #{mlp_forward.1} parent=0 // loop_footer
    %s17 = sadd.s32 1, %s13
  $region7: #{mlp_forward.1} parent=0 // loop_footer_branch
    %12 = sbr.rel target = $region3
  $region8: #{mlp_forward.1} parent=0 // loop_exit
    _

</llo_original>
